<compile_context>
chip_gen: v7x
topology: tpu7x:2x2x1
jax: 0.10.0
libtpu: 0.0.40
codegen_flags: <defaults>
</compile_context>

<pallas_src>
import functools

import jax
import jax.numpy as jnp
from jax.experimental import pallas as pl
from jax.experimental.pallas import tpu as pltpu


def _rmsnorm_kernel(x_ref, w_ref, o_ref, *, eps: float, inv_dim: float):
    # Compute in float32 regardless of input dtype (matches x.float() in torch).
    x = x_ref[...].astype(jnp.float32)                        # (tm, D)
    ms = jnp.sum(x * x, axis=-1, keepdims=True) * inv_dim     # mean via XLU sum * 1/D
    inv = jax.lax.rsqrt(ms + eps)                             # EUP rsqrt (free slot)
    normed = (x * inv).astype(x_ref.dtype)                    # .type_as(x) — torch cast order
    # Weight multiply happens after the cast-back, like the torch module; the
    # result promotes to o_ref.dtype (= result_type(x, weight)) like torch.
    o_ref[...] = (normed * w_ref[...]).astype(o_ref.dtype)


def _sublane_multiple(dtype) -> int:
    # Sub-32-bit dtypes pack along sublanes: f32 -> 8, bf16 -> 16, int8/fp8 -> 32.
    return {4: 8, 2: 16, 1: 32}.get(jnp.dtype(dtype).itemsize, 8)


def _vmem_limit_bytes() -> int:
    """min(64 MiB, 75% of physical VMEM): ~48 MiB on v7x, 64 MiB on v5e/v6e."""
    try:
        cap = int(pltpu.get_tpu_info().vmem_capacity_bytes)
    except Exception:
        cap = 128 * 1024 * 1024   # v5e/v6e default if the query is unavailable
    return min(64 * 1024 * 1024, int(0.75 * cap))


def _pick_row_tile(rows: int, dim: int, x_dtype, out_dtype, vmem_limit: int,
                   max_tile_rows: int = 4096) -> int:
    """Largest dtype-aligned row tile whose full VMEM footprint fits the budget."""
    sub = _sublane_multiple(x_dtype)
    x_bytes = jnp.dtype(x_dtype).itemsize
    o_bytes = jnp.dtype(out_dtype).itemsize
    # Steady-state VMEM per row: double-buffered x tile + double-buffered out
    # tile + ~two f32-wide temporaries (the x.float() upcast and x*inv), which
    # Mosaic typically materializes for sub-32-bit inputs.
    bytes_per_row = dim * (2 * x_bytes + 2 * o_bytes + 2 * 4)
    budget = int(0.75 * vmem_limit)       # headroom for Mosaic internal scratch
    cap = (budget // bytes_per_row) // sub * sub
    cap = max(sub, min(cap, max_tile_rows))
    rows_rounded = pl.cdiv(rows, sub) * sub
    return min(cap, rows_rounded)


def rmsnorm(x: jax.Array, weight: jax.Array, eps: float = 1e-6,
            row_tile: int | None = None) -> jax.Array:
    """RMSNorm over the last axis of x; weight has shape (dim,).

    Output dtype is jnp.result_type(x.dtype, weight.dtype) — the same promotion
    torch performs for `output * self.weight` (an fp32 weight with bf16 x gives
    an fp32 output; matching dtypes stay in x.dtype).
    """
    orig_shape = x.shape
    dim = orig_shape[-1]
    assert weight.shape == (dim,), f"weight must have shape ({dim},), got {weight.shape}"

    out_dtype = jnp.result_type(x.dtype, weight.dtype)

    # Rows stream through the kernel with D on lanes.  NOTE: if dim is not a
    # multiple of 128 the output stores become masked (lane-sparse) vst's;
    # still correct, just slower.  Typical LLM dims (multiples of 128) are fine.
    x2d = x.reshape(-1, dim)                                   # (R, D)
    rows = x2d.shape[0]
    w2d = weight.reshape(1, dim)                               # (1, D) lane layout

    vmem_limit = _vmem_limit_bytes()
    if row_tile is None:
        row_tile = _pick_row_tile(rows, dim, x.dtype, out_dtype, vmem_limit)

    # No pad/slice for ragged row counts: Pallas clips the last partial block.
    # Each output row is independent, so the out-of-range rows in that block
    # are computed on garbage but never stored (do not add cross-row reductions
    # to this kernel without restoring explicit masking).
    grid = (pl.cdiv(rows, row_tile),)

    out = pl.pallas_call(
        functools.partial(_rmsnorm_kernel, eps=eps, inv_dim=1.0 / dim),
        out_shape=jax.ShapeDtypeStruct((rows, dim), out_dtype),
        grid_spec=pltpu.PrefetchScalarGridSpec(
            num_scalar_prefetch=0,
            grid=grid,
            in_specs=[
                pl.BlockSpec((row_tile, dim), lambda i: (i, 0)),   # x row tile
                # Weight block is constant across the grid; double-buffering it
                # only costs dim*itemsize bytes of VMEM.
                # TODO(synk): single-buffer it via pipeline_mode=pl.Buffered(1)
                # once that path is verified on the target jax version.
                pl.BlockSpec((1, dim), lambda i: (0, 0)),
            ],
            out_specs=pl.BlockSpec((row_tile, dim), lambda i: (i, 0)),
        ),
        compiler_params=pltpu.CompilerParams(
            dimension_semantics=("parallel",),   # shards the row grid across TCs on v7x
            vmem_limit_bytes=vmem_limit,
        ),
    )(x2d, w2d)

    return out.reshape(orig_shape)


def _rmsnorm_ref(x, weight, eps=1e-6):
    xf = x.astype(jnp.float32)
    inv = jax.lax.rsqrt(jnp.mean(xf * xf, axis=-1, keepdims=True) + eps)
    return (xf * inv).astype(x.dtype) * weight   # same promotion as torch


if __name__ == "__main__":
    key = jax.random.PRNGKey(0)
    k = jax.random.split(key, 6)

    # 1) f32 case (row count divides the tile exactly).
    #    torch inits weight to zeros; use non-trivial values so the scale path
    #    is actually exercised.
    x = jax.random.normal(k[0], (2, 8, 128), dtype=jnp.float32)
    w = jax.random.normal(k[1], (128,), dtype=jnp.float32)
    out = jax.block_until_ready(rmsnorm(x, w, eps=1e-6))
    ref = _rmsnorm_ref(x, w, eps=1e-6)
    assert out.shape == x.shape and out.dtype == jnp.float32
    assert float(jnp.max(jnp.abs(out - ref))) < 1e-5

    # 2) bf16 case with a ragged row count (15 rows vs a 16-row tile):
    #    exercises partial-block clipping with no pad/slice in the wrapper.
    xb = jax.random.normal(k[2], (3, 5, 256), dtype=jnp.bfloat16)
    wb = jax.random.normal(k[3], (256,), dtype=jnp.bfloat16)
    outb = jax.block_until_ready(rmsnorm(xb, wb, eps=1e-6))
    refb = _rmsnorm_ref(xb, wb, eps=1e-6)
    assert outb.shape == xb.shape and outb.dtype == jnp.bfloat16
    assert float(jnp.max(jnp.abs(outb.astype(jnp.float32)
                                 - refb.astype(jnp.float32)))) < 2e-2

    # 3) mixed dtypes (bf16 activations, fp32 weight) -> fp32 output, matching
    #    torch's `output * self.weight` promotion; also a ragged row count.
    xm = jax.random.normal(k[4], (4, 7, 128), dtype=jnp.bfloat16)
    wm = jax.random.normal(k[5], (128,), dtype=jnp.float32)
    outm = jax.block_until_ready(rmsnorm(xm, wm, eps=1e-6))
    refm = _rmsnorm_ref(xm, wm, eps=1e-6)
    assert outm.shape == xm.shape and outm.dtype == jnp.float32
    assert float(jnp.max(jnp.abs(outm - refm))) < 2e-2

    print("KERNEL_OK")
</pallas_src>

<mosaic_0001>
module attributes {stable_mosaic.version = 11 : i64} {
  func.func @_rmsnorm_kernel(%arg0: i32, %arg1: memref<16x128xf32, #tpu.memory_space<vmem>>, %arg2: memref<1x128xf32, #tpu.memory_space<vmem>>, %arg3: memref<16x128xf32, #tpu.memory_space<vmem>>) attributes {dimension_semantics = [#tpu.dimension_semantics<parallel>], iteration_bounds = array<i64: 1>, scalar_prefetch = 0 : i64, scratch_operands = 0 : i64, tpu.core_type = #tpu.core_type<tc>, window_params = [{transform_indices = @transform_0, window_bounds = array<i64: 16, 128>}, {pipeline_mode = #tpu.pipeline_mode<synchronous>, transform_indices = @transform_1, window_bounds = array<i64: 1, 128>}, {transform_indices = @transform_2, window_bounds = array<i64: 16, 128>}]} {
    %c0 = arith.constant 0 : index
    %c0_0 = arith.constant 0 : index
    %0 = vector.load %arg1[%c0, %c0_0] : memref<16x128xf32, #tpu.memory_space<vmem>>, vector<16x128xf32>
    %1 = arith.mulf %0, %0 : vector<16x128xf32>
    %cst = arith.constant dense<0.000000e+00> : vector<16xf32>
    %2 = vector.multi_reduction <add>, %1, %cst [1] : vector<16x128xf32> to vector<16xf32>
    %3 = vector.shape_cast %2 : vector<16xf32> to vector<16x1xf32>
    %cst_1 = arith.constant 7.812500e-03 : f32
    %4 = vector.broadcast %cst_1 : f32 to vector<16x1xf32>
    %5 = arith.mulf %3, %4 : vector<16x1xf32>
    %cst_2 = arith.constant 9.99999997E-7 : f32
    %6 = vector.broadcast %cst_2 : f32 to vector<16x1xf32>
    %7 = arith.addf %5, %6 : vector<16x1xf32>
    %8 = math.rsqrt %7 : vector<16x1xf32>
    %9 = vector.broadcast %8 : vector<16x1xf32> to vector<16x128xf32>
    %10 = arith.mulf %0, %9 : vector<16x128xf32>
    %c0_3 = arith.constant 0 : index
    %c0_4 = arith.constant 0 : index
    %11 = vector.load %arg2[%c0_3, %c0_4] : memref<1x128xf32, #tpu.memory_space<vmem>>, vector<1x128xf32>
    %12 = vector.broadcast %11 : vector<1x128xf32> to vector<16x128xf32>
    %13 = arith.mulf %10, %12 : vector<16x128xf32>
    %c0_5 = arith.constant 0 : index
    %c0_6 = arith.constant 0 : index
    %14 = vector.load %arg3[%c0_5, %c0_6] : memref<16x128xf32, #tpu.memory_space<vmem>>, vector<16x128xf32>
    tpu.vector_store %arg3[%c0_5, %c0_6], %13 {strides = array<i32>} : memref<16x128xf32, #tpu.memory_space<vmem>>, vector<16x128xf32>,
    return
  }
  func.func @transform_0(%arg0: i32) -> (i32, i32) {
    %c0_i32 = arith.constant 0 : i32
    %c0_i32_0 = arith.constant 0 : i32
    return %arg0, %c0_i32 : i32, i32
  }
  func.func @transform_1(%arg0: i32) -> (i32, i32) {
    %c0_i32 = arith.constant 0 : i32
    %c0_i32_0 = arith.constant 0 : i32
    %c0_i32_1 = arith.constant 0 : i32
    return %c0_i32, %c0_i32_0 : i32, i32
  }
  func.func @transform_2(%arg0: i32) -> (i32, i32) {
    %c0_i32 = arith.constant 0 : i32
    %c0_i32_0 = arith.constant 0 : i32
    return %arg0, %c0_i32 : i32, i32
  }
}

</mosaic_0001>

<llo_original>
// kernel: tpu_custom_call.1
$region0: #{tpu_custom_call.1}
  #allocation0 [shape = 'u32[]', space=smem, size = 0x4, offset = 0x4, fixed_abs, tag = 'smem constant byte address 0x4 - core index']
  #allocation1 [shape = 'u32[144,128]{1,0:T(1,128)}', space=vmem, size = 0x12000, scoped, tag = 'internal scratch']
  %s0 = inlined_call_operand.hbm [shape: f32[16,128], index: 0, kind: input, shape index: {}]
  %s1 = inlined_call_operand.hbm [shape: f32[1,128], index: 1, kind: input, shape index: {}]
  %s2 = inlined_call_operand.hbm [shape: f32[16,128], index: 2, kind: output, shape index: {}]
  %s3 = sld [smem:[#allocation0]]
  $region26: #{tpu_custom_call.1} parent=0
    _
  %s5 = ssub.s32 1, %s3
  %s6 = scalar_select 0, %s5, %s3
  $region1: #{tpu_custom_call.1} parent=0
    #allocation2 [shape = 'u8[8192]{0}', space=vmem, size = 0x2000, scoped, tag = 'input window, operand 0, single buffered']
    #allocation3 [shape = 's32[1]{0}', space=sflag, size = 0x4, scoped, tag = 'scoped memory for tpu_custom_call.1']
    #allocation4 [shape = 's32[1]{0}', space=sflag, size = 0x4, scoped, tag = 'scoped memory for tpu_custom_call.1']
    #allocation5 [shape = 'u8[512]{0}', space=vmem, size = 0x400, scoped, tag = 'input window, operand 1, single buffered']
    #allocation6 [shape = 's32[1]{0}', space=sflag, size = 0x4, scoped, tag = 'scoped memory for tpu_custom_call.1']
    #allocation7 [shape = 'u8[8192]{0}', space=vmem, size = 0x2000, scoped, tag = 'output window, operand 0, single buffered']
    %7 = vsyncpa [#allocation3], 0
    %8 = vsyncpa [#allocation6], 0
    %9 = vsyncpa [#allocation4], 0
    // Predicated region
    $region2: #{tpu_custom_call.1} parent=1 // pred_check
      _
    $region3: #{tpu_custom_call.1} parent=1 // pred_check_branch
      %11 = sbr.rel (0) target = $region5
    $region4: #{tpu_custom_call.1} parent=1 // pred_region
      %s13 = ssub.s32 256, 256
      %14 = vsyncadd [#allocation3], %s13
      %s15 = sshll.u32 [#allocation2], 4
      %s16 = int_to_ptr.vmem [resolvable:$true] %s15
      %21 = dma.hbm_to_vmem [thread:$0]  %s0, 256, %s16, [#allocation3], 128, 128, 8
    $region5: #{tpu_custom_call.1} parent=1 // pred_fallthru
      _
    // Predicated region
    $region6: #{tpu_custom_call.1} parent=1 // pred_check
      _
    $region7: #{tpu_custom_call.1} parent=1 // pred_check_branch
      %23 = sbr.rel (0) target = $region9
    $region8: #{tpu_custom_call.1} parent=1 // pred_region
      %s25 = ssub.s32 16, 16
      %26 = vsyncadd [#allocation6], %s25
      %s28 = sshll.u32 [#allocation5], 4
      %s29 = int_to_ptr.vmem [resolvable:$true] %s28
      %31 = dma.hbm_to_vmem [thread:$0]  %s1, 16, %s29, [#allocation6]
    $region9: #{tpu_custom_call.1} parent=1 // pred_fallthru
      _
    // Predicated region
    $region10: #{tpu_custom_call.1} parent=1 // pred_check
      _
    $region11: #{tpu_custom_call.1} parent=1 // pred_check_branch
      %33 = sbr.rel (0) target = $region13
    $region12: #{tpu_custom_call.1} parent=1 // pred_region
      %34 = dma.done [#allocation3], 256
    $region13: #{tpu_custom_call.1} parent=1 // pred_fallthru
      _
    // Predicated region
    $region14: #{tpu_custom_call.1} parent=1 // pred_check
      _
    $region15: #{tpu_custom_call.1} parent=1 // pred_check_branch
      %36 = sbr.rel (0) target = $region17
    $region16: #{tpu_custom_call.1} parent=1 // pred_region
      %37 = dma.done [#allocation6], 16
    $region17: #{tpu_custom_call.1} parent=1 // pred_fallthru
      _
    %v38 = vld [vmem:[#allocation2] sm:$0xff]
    %v39 = vld [vmem:[#allocation2 + $0x8] sm:$0xff]
    %v40 = vmul.f32 %v38, %v38
    %v41 = vmul.f32 %v39, %v39
    %42 = vadd.xlane.f32.xlu0 %v40
    %v43 = vpop.xlane.xlu0 %42
    %44 = vadd.xlane.f32.xlu0 %v41
    %v45 = vpop.xlane.xlu0 %44
    %v46 = vmul.f32 %v43, 0.0078125
    %v47 = vmul.f32 %v45, 0.0078125
    %v48 = vadd.f32 %v46, 1e-06
    %v49 = vadd.f32 %v47, 1e-06
    %v50 = vrsqrt.pop %v48
    %v51 = vrsqrt.pop %v49
    %v52 = vmul.f32 %v38, %v50
    %v53 = vmul.f32 %v39, %v51
    %v54 = vld [vmem:[#allocation5] sm:$0x1]
    %v56 = vlaneseq
    %v57 = vshrl.u32 %v56, 7
    %v58 = vsub.s32 0, %v57
    %v59 = vrot.slane %v54, %v58
    %v61 = vmul.f32 %v52, %v59
    %v62 = vmul.f32 %v53, %v59
    %63 = vst [vmem:[#allocation7] sm:$0xff] %v61
    %64 = vst [vmem:[#allocation7 + $0x8] sm:$0xff] %v62
    // Predicated region
    $region18: #{tpu_custom_call.1} parent=1 // pred_check
      _
    $region19: #{tpu_custom_call.1} parent=1 // pred_check_branch
      %66 = sbr.rel (0) target = $region21
    $region20: #{tpu_custom_call.1} parent=1 // pred_region
      %s68 = ssub.s32 256, 256
      %69 = vsyncadd [#allocation4], %s68
      %s70 = sshll.u32 [#allocation7], 4
      %s71 = int_to_ptr.vmem [resolvable:$true] %s70
      %76 = dma.vmem_to_hbm [thread:$0]  %s71, 256, %s2, [#allocation4], 128, 128, 8
    $region21: #{tpu_custom_call.1} parent=1 // pred_fallthru
      _
    // Predicated region
    $region22: #{tpu_custom_call.1} parent=1 // pred_check
      _
    $region23: #{tpu_custom_call.1} parent=1 // pred_check_branch
      %78 = sbr.rel (0) target = $region25
    $region24: #{tpu_custom_call.1} parent=1 // pred_region
      %79 = dma.done [#allocation4], 256
    $region25: #{tpu_custom_call.1} parent=1 // pred_fallthru
      _
    %80 = vsyncpa [#allocation3], 1
    %81 = vsyncpa [#allocation6], 1
    %82 = vsyncpa [#allocation4], 1

</llo_original>
